<compile_context>
chip_gen: v5e
topology: v5e:2x2
jax: 0.10.0
libtpu: 0.0.40
codegen_flags: <defaults>
</compile_context>

<pallas_src>
import functools

import jax
import jax.numpy as jnp
from jax.experimental import pallas as pl
from jax.experimental.pallas import tpu as pltpu

N_CLASSES = 10
LATENT_DIM = 32
C_PAD = 16                      # one-hot width padded 10 -> 16
K_IN = LATENT_DIM + C_PAD       # 48: fused layer-1 contraction width
H1, H2, H3 = 128, 64, 1


def _round_up(a, m):
    return (a + m - 1) // m * m


def _pick_tb(batch, tb_max=2048):
    """Batch tile on the lane axis: as large as practical (>=128, multiple of 128),
    capped so the grid keeps >= 2 steps when possible (both TensorCores on v7x)."""
    tb = min(tb_max, _round_up(batch, 128))
    if batch > 128:
        tb = min(tb, _round_up((batch + 1) // 2, 128))
    return max(tb, 128)


@functools.lru_cache(maxsize=1)
def _bf16_elementwise_supported():
    """bf16 VALU exists on v6e / v7x; keep elementwise math in f32 elsewhere (v5e...)."""
    try:
        kind = jax.devices()[0].device_kind.lower()
    except Exception:
        return False
    return ("v6" in kind) or ("v7" in kind) or ("7x" in kind)


def _leaky_relu(x, slope=0.2):
    return jnp.where(x >= 0, x, slope * x)


def discriminator_kernel(x_ref, labels_ref, w1_ref, w2_ref, b2_ref, w3_ref,
                         b3_ref, out_ref, *, ew_dtype):
    tb = x_ref.shape[0]

    # Fused d_in = [x | one_hot(labels)]: the x tile arrives with K_IN-LATENT zero tail
    # columns, so adding the one-hot (shifted by LATENT_DIM) there is exact. One cheap
    # iota-compare + add instead of an in-kernel concat / second matmul.
    # Note: out-of-range labels give an all-zero one-hot (zero embedding + no b1)
    # rather than raising like torch.nn.Embedding.
    col = jax.lax.broadcasted_iota(jnp.int32, (tb, K_IN), 1)
    one_hot = (col == labels_ref[...] + LATENT_DIM).astype(jnp.bfloat16)  # (TB, K_IN)
    d_in = x_ref[...] + one_hot                                           # (TB, K_IN) bf16

    # Layer 1: single MXU matmul (embedding table and b1 folded into w1). Contracting
    # the shared last axis == w1 @ d_in^T -> feature-major (H1, TB) activation.
    h = jax.lax.dot_general(w1_ref[...], d_in, (((1,), (1,)), ((), ())),
                            preferred_element_type=jnp.float32)           # (H1, TB) f32
    h = _leaky_relu(h.astype(ew_dtype))

    # Layer 2 + LeakyReLU(0.2)
    h = jnp.dot(w2_ref[...], h.astype(jnp.bfloat16),
                preferred_element_type=jnp.float32) + b2_ref[...]         # (H2, TB) f32
    h = _leaky_relu(h.astype(ew_dtype))

    # Layer 3 (M=1): VPU multiply by the w3 column + sublane-axis reduction
    # (cheaper than a full MXU push/drain for a single output row); scalar b3 from SMEM.
    logits = jnp.sum(h.astype(jnp.float32) * w3_ref[...],
                     axis=0, keepdims=True) + b3_ref[0, 0]                # (1, TB) f32
    out_ref[...] = jax.nn.sigmoid(logits)


def prepare_params(p):
    """PyTorch-layout params -> kernel layout. Call ONCE at parameter-load time.

    Exact algebra: cat([x, emb(l)]) @ W1 + b1 == x @ W1x + (emb @ W1e + b1)[l],
    so embedding + b1 + the concat collapse into one (H1, K_IN) fused weight.
    """
    table = p["emb"] @ p["w1e"] + p["b1"]                                 # (C, H1) f32
    table_pad = jnp.zeros((C_PAD, H1), jnp.float32).at[:N_CLASSES].set(table)
    w1 = jnp.concatenate([p["w1x"], table_pad], axis=0).T                 # (H1, K_IN)
    return {
        "w1": w1.astype(jnp.bfloat16),                                    # (H1, 48)
        "w2": p["w2"].T.astype(jnp.bfloat16),                             # (H2, H1)
        "b2": p["b2"].reshape(H2, 1).astype(jnp.float32),                 # (H2, 1)
        "w3": p["w3"].astype(jnp.float32).reshape(H2, 1),                 # (H2, 1) column
        "b3": p["b3"].reshape(1, 1).astype(jnp.float32),                  # (1, 1) -> SMEM
    }


@functools.partial(jax.jit, static_argnames=("tb", "bf16_elementwise"))
def _forward(x, labels, kp, *, tb, bf16_elementwise):
    B = x.shape[0]
    Bp = _round_up(B, tb)
    nb = Bp // tb
    pad = Bp - B

    # Single fused pad (+cast): batch padded to Bp, features padded 32 -> K_IN with
    # zeros so the kernel can drop the one-hot into the tail columns. No transpose.
    x_p = jnp.pad(x, ((0, pad), (0, K_IN - LATENT_DIM))).astype(jnp.bfloat16)
    labels_p = jnp.pad(labels.astype(jnp.int32).reshape(B, 1), ((0, pad), (0, 0)))

    ew_dtype = jnp.bfloat16 if bf16_elementwise else jnp.float32
    kernel = functools.partial(discriminator_kernel, ew_dtype=ew_dtype)

    out_fm = pl.pallas_call(
        kernel,
        out_shape=jax.ShapeDtypeStruct((H3, Bp), jnp.float32),
        grid=(nb,),
        in_specs=[
            pl.BlockSpec((tb, K_IN), lambda i: (i, 0)),        # x+pad   (streamed)
            pl.BlockSpec((tb, 1), lambda i: (i, 0)),           # labels  (streamed)
            pl.BlockSpec((H1, K_IN), lambda i: (0, 0)),        # fused W1 (resident)
            pl.BlockSpec((H2, H1), lambda i: (0, 0)),          # W2^T     (resident)
            pl.BlockSpec((H2, 1), lambda i: (0, 0)),           # b2       (resident)
            pl.BlockSpec((H2, 1), lambda i: (0, 0)),           # w3 col   (resident)
            pl.BlockSpec(memory_space=pltpu.SMEM),             # b3 scalar in SMEM
        ],
        out_specs=pl.BlockSpec((H3, tb), lambda i: (0, i)),    # lane-dense output
        compiler_params=pltpu.CompilerParams(
            dimension_semantics=("parallel",)),                # 2-TC sharding on v7x
    )(x_p, labels_p, kp["w1"], kp["w2"], kp["b2"], kp["w3"], kp["b3"])

    return out_fm[:, :B].T                                     # (B, 1)


def discriminator_forward(x, labels, kparams, *, tb=None, tb_max=2048):
    """x: (B, latent_dim) f32; labels: (B,) int; kparams from prepare_params -> (B, 1)."""
    if tb is None:
        tb = _pick_tb(x.shape[0], tb_max)
    return _forward(x, labels, kparams, tb=tb,
                    bf16_elementwise=bool(_bf16_elementwise_supported()))


def init_params(key):
    ks = jax.random.split(key, 8)
    s = 0.1
    return {
        # nn.Embedding(n_classes, n_classes)
        "emb": s * jax.random.normal(ks[0], (N_CLASSES, N_CLASSES), jnp.float32),
        # Linear(n_classes + latent_dim, 128), stored (in, out), split for fused concat.
        "w1x": s * jax.random.normal(ks[1], (LATENT_DIM, H1), jnp.float32),
        "w1e": s * jax.random.normal(ks[2], (N_CLASSES, H1), jnp.float32),
        "b1": s * jax.random.normal(ks[3], (1, H1), jnp.float32),
        # Linear(128, 64)
        "w2": s * jax.random.normal(ks[4], (H1, H2), jnp.float32),
        "b2": s * jax.random.normal(ks[5], (1, H2), jnp.float32),
        # Linear(64, 1)
        "w3": s * jax.random.normal(ks[6], (H2, H3), jnp.float32),
        "b3": s * jax.random.normal(ks[7], (1, H3), jnp.float32),
    }


def reference_forward_f32(x, labels, p):
    """Full-f32 reference matching the original PyTorch module."""
    emb = p["emb"][labels]
    h = x @ p["w1x"] + emb @ p["w1e"] + p["b1"]
    h = jnp.where(h >= 0, h, 0.2 * h)
    h = h @ p["w2"] + p["b2"]
    h = jnp.where(h >= 0, h, 0.2 * h)
    h = h @ p["w3"] + p["b3"]
    return jax.nn.sigmoid(h)


def reference_forward_mixed(x, labels, kp, ew_dtype):
    """Same mixed-precision math as the kernel (bf16 operands, f32 accumulation)."""
    one_hot = jax.nn.one_hot(labels, C_PAD, dtype=jnp.float32)
    d_in = jnp.concatenate([x, one_hot], axis=1).astype(jnp.bfloat16)     # (B, K_IN)
    h = jnp.dot(d_in, kp["w1"].T, preferred_element_type=jnp.float32)     # (B, H1)
    h = _leaky_relu(h.astype(ew_dtype))
    h = jnp.dot(h.astype(jnp.bfloat16), kp["w2"].T,
                preferred_element_type=jnp.float32) + kp["b2"].T          # (B, H2)
    h = _leaky_relu(h.astype(ew_dtype))
    logits = h.astype(jnp.float32) @ kp["w3"] + kp["b3"][0, 0]            # (B, 1)
    return jax.nn.sigmoid(logits)


if __name__ == "__main__":
    key = jax.random.PRNGKey(0)
    kx, kl, kparam = jax.random.split(key, 3)

    B = 300  # not a multiple of the batch tile -> exercises padding + 2-step grid
    x = jax.random.normal(kx, (B, LATENT_DIM), jnp.float32)
    labels = jax.random.randint(kl, (B,), 0, N_CLASSES, jnp.int32)

    params = init_params(kparam)
    kp = prepare_params(params)   # hoisted: done once at parameter-load time

    out = jax.block_until_ready(discriminator_forward(x, labels, kp))
    assert out.shape == (B, 1), out.shape

    ew_dtype = jnp.bfloat16 if _bf16_elementwise_supported() else jnp.float32
    ref_mixed = reference_forward_mixed(x, labels, kp, ew_dtype)
    ref_f32 = reference_forward_f32(x, labels, params)

    err_mixed = float(jnp.max(jnp.abs(out - ref_mixed)))
    err_f32 = float(jnp.max(jnp.abs(out - ref_f32)))
    assert err_mixed < 3e-3, f"mixed-precision mismatch: {err_mixed}"
    assert err_f32 < 5e-2, f"f32 semantics drift too large: {err_f32}"

    print("KERNEL_OK")
</pallas_src>

<mosaic_0001>
module attributes {stable_mosaic.version = 11 : i64} {
  func.func @discriminator_kernel(%arg0: i32, %arg1: memref<256x48xbf16, #tpu.memory_space<vmem>>, %arg2: memref<256x1xi32, #tpu.memory_space<vmem>>, %arg3: memref<128x48xbf16, #tpu.memory_space<vmem>>, %arg4: memref<64x128xbf16, #tpu.memory_space<vmem>>, %arg5: memref<64x1xf32, #tpu.memory_space<vmem>>, %arg6: memref<64x1xf32, #tpu.memory_space<vmem>>, %arg7: memref<1x1xf32, #tpu.memory_space<smem>>, %arg8: memref<1x256xf32, #tpu.memory_space<vmem>>) attributes {dimension_semantics = [#tpu.dimension_semantics<parallel>], iteration_bounds = array<i64: 2>, scalar_prefetch = 0 : i64, scratch_operands = 0 : i64, tpu.core_type = #tpu.core_type<tc>, window_params = [{transform_indices = @transform_0, window_bounds = array<i64: 256, 48>}, {transform_indices = @transform_1, window_bounds = array<i64: 256, 1>}, {pipeline_mode = #tpu.pipeline_mode<synchronous>, transform_indices = @transform_2, window_bounds = array<i64: 128, 48>}, {pipeline_mode = #tpu.pipeline_mode<synchronous>, transform_indices = @transform_3, window_bounds = array<i64: 64, 128>}, {pipeline_mode = #tpu.pipeline_mode<synchronous>, transform_indices = @transform_4, window_bounds = array<i64: 64, 1>}, {pipeline_mode = #tpu.pipeline_mode<synchronous>, transform_indices = @transform_5, window_bounds = array<i64: 64, 1>}, {transform_indices = @transform_6, window_bounds = array<i64: 1, 1>}, {transform_indices = @transform_7, window_bounds = array<i64: 1, 256>}]} {
    %0 = tpu.iota {dimensions = array<i32: 1>} : vector<256x48xi32>
    %c0 = arith.constant 0 : index
    %c0_0 = arith.constant 0 : index
    %1 = vector.load %arg2[%c0, %c0_0] : memref<256x1xi32, #tpu.memory_space<vmem>>, vector<256x1xi32>
    %c32_i32 = arith.constant 32 : i32
    %2 = vector.broadcast %c32_i32 : i32 to vector<256x1xi32>
    %3 = arith.addi %1, %2 : vector<256x1xi32>
    %4 = vector.broadcast %3 : vector<256x1xi32> to vector<256x48xi32>
    %5 = arith.cmpi eq, %0, %4 : vector<256x48xi32>
    %6 = arith.extui %5 : vector<256x48xi1> to vector<256x48xi32>
    %7 = arith.sitofp %6 : vector<256x48xi32> to vector<256x48xf32>
    %8 = arith.truncf %7 : vector<256x48xf32> to vector<256x48xbf16>
    %c0_1 = arith.constant 0 : index
    %c0_2 = arith.constant 0 : index
    %9 = vector.load %arg1[%c0_1, %c0_2] : memref<256x48xbf16, #tpu.memory_space<vmem>>, vector<256x48xbf16>
    %10 = arith.addf %9, %8 : vector<256x48xbf16>
    %c0_3 = arith.constant 0 : index
    %c0_4 = arith.constant 0 : index
    %11 = vector.load %arg3[%c0_3, %c0_4] : memref<128x48xbf16, #tpu.memory_space<vmem>>, vector<128x48xbf16>
    %cst = arith.constant dense<0.000000e+00> : vector<128x256xf32>
    %12 = tpu.matmul %11, %10, %cst {dimension_numbers = #tpu.dot_dimension_numbers<[1], [1], [0], [0], [0, 0, 1, 0], [], []>} : vector<128x48xbf16>, vector<256x48xbf16>, vector<128x256xf32> -> vector<128x256xf32>
    %cst_5 = arith.constant 0.000000e+00 : f32
    %13 = vector.broadcast %cst_5 : f32 to vector<128x256xf32>
    %14 = arith.cmpf oge, %12, %13 : vector<128x256xf32>
    %cst_6 = arith.constant 2.000000e-01 : f32
    %15 = vector.broadcast %cst_6 : f32 to vector<128x256xf32>
    %16 = arith.mulf %15, %12 : vector<128x256xf32>
    %17 = arith.select %14, %12, %16 : vector<128x256xi1>, vector<128x256xf32>
    %c0_7 = arith.constant 0 : index
    %c0_8 = arith.constant 0 : index
    %18 = vector.load %arg4[%c0_7, %c0_8] : memref<64x128xbf16, #tpu.memory_space<vmem>>, vector<64x128xbf16>
    %19 = arith.truncf %17 : vector<128x256xf32> to vector<128x256xbf16>
    %cst_9 = arith.constant dense<0.000000e+00> : vector<64x256xf32>
    %20 = tpu.matmul %18, %19, %cst_9 {dimension_numbers = #tpu.dot_dimension_numbers<[1], [0], [0], [1], [0, 0, 1, 1], [], []>} : vector<64x128xbf16>, vector<128x256xbf16>, vector<64x256xf32> -> vector<64x256xf32>
    %c0_10 = arith.constant 0 : index
    %c0_11 = arith.constant 0 : index
    %21 = vector.load %arg5[%c0_10, %c0_11] : memref<64x1xf32, #tpu.memory_space<vmem>>, vector<64x1xf32>
    %22 = vector.broadcast %21 : vector<64x1xf32> to vector<64x256xf32>
    %23 = arith.addf %20, %22 : vector<64x256xf32>
    %cst_12 = arith.constant 0.000000e+00 : f32
    %24 = vector.broadcast %cst_12 : f32 to vector<64x256xf32>
    %25 = arith.cmpf oge, %23, %24 : vector<64x256xf32>
    %cst_13 = arith.constant 2.000000e-01 : f32
    %26 = vector.broadcast %cst_13 : f32 to vector<64x256xf32>
    %27 = arith.mulf %26, %23 : vector<64x256xf32>
    %28 = arith.select %25, %23, %27 : vector<64x256xi1>, vector<64x256xf32>
    %c0_14 = arith.constant 0 : index
    %c0_15 = arith.constant 0 : index
    %29 = vector.load %arg6[%c0_14, %c0_15] : memref<64x1xf32, #tpu.memory_space<vmem>>, vector<64x1xf32>
    %30 = vector.broadcast %29 : vector<64x1xf32> to vector<64x256xf32>
    %31 = arith.mulf %28, %30 : vector<64x256xf32>
    %cst_16 = arith.constant dense<0.000000e+00> : vector<256xf32>
    %32 = vector.multi_reduction <add>, %31, %cst_16 [0] : vector<64x256xf32> to vector<256xf32>
    %33 = vector.shape_cast %32 : vector<256xf32> to vector<1x256xf32>
    %c0_17 = arith.constant 0 : index
    %c0_18 = arith.constant 0 : index
    %34 = memref.load %arg7[%c0_17, %c0_18] : memref<1x1xf32, #tpu.memory_space<smem>>
    %35 = vector.broadcast %34 : f32 to vector<1x256xf32>
    %36 = arith.addf %33, %35 : vector<1x256xf32>
    %37 = arith.negf %36 : vector<1x256xf32>
    %38 = math.exp %37 : vector<1x256xf32>
    %cst_19 = arith.constant 1.000000e+00 : f32
    %39 = vector.broadcast %cst_19 : f32 to vector<1x256xf32>
    %40 = arith.addf %39, %38 : vector<1x256xf32>
    %41 = arith.divf %39, %40 : vector<1x256xf32>
    %c0_20 = arith.constant 0 : index
    %c0_21 = arith.constant 0 : index
    %42 = vector.load %arg8[%c0_20, %c0_21] : memref<1x256xf32, #tpu.memory_space<vmem>>, vector<1x256xf32>
    tpu.vector_store %arg8[%c0_20, %c0_21], %41 {strides = array<i32>} : memref<1x256xf32, #tpu.memory_space<vmem>>, vector<1x256xf32>,
    return
  }
  func.func @transform_0(%arg0: i32) -> (i32, i32) {
    %c0_i32 = arith.constant 0 : i32
    %c0_i32_0 = arith.constant 0 : i32
    return %arg0, %c0_i32 : i32, i32
  }
  func.func @transform_1(%arg0: i32) -> (i32, i32) {
    %c0_i32 = arith.constant 0 : i32
    %c0_i32_0 = arith.constant 0 : i32
    return %arg0, %c0_i32 : i32, i32
  }
  func.func @transform_2(%arg0: i32) -> (i32, i32) {
    %c0_i32 = arith.constant 0 : i32
    %c0_i32_0 = arith.constant 0 : i32
    %c0_i32_1 = arith.constant 0 : i32
    return %c0_i32, %c0_i32_0 : i32, i32
  }
  func.func @transform_3(%arg0: i32) -> (i32, i32) {
    %c0_i32 = arith.constant 0 : i32
    %c0_i32_0 = arith.constant 0 : i32
    %c0_i32_1 = arith.constant 0 : i32
    return %c0_i32, %c0_i32_0 : i32, i32
  }
  func.func @transform_4(%arg0: i32) -> (i32, i32) {
    %c0_i32 = arith.constant 0 : i32
    %c0_i32_0 = arith.constant 0 : i32
    %c0_i32_1 = arith.constant 0 : i32
    return %c0_i32, %c0_i32_0 : i32, i32
  }
  func.func @transform_5(%arg0: i32) -> (i32, i32) {
    %c0_i32 = arith.constant 0 : i32
    %c0_i32_0 = arith.constant 0 : i32
    %c0_i32_1 = arith.constant 0 : i32
    return %c0_i32, %c0_i32_0 : i32, i32
  }
  func.func @transform_6(%arg0: i32) -> (i32, i32) {
    %c0_i32 = arith.constant 0 : i32
    %c0_i32_0 = arith.constant 0 : i32
    %c0_i32_1 = arith.constant 0 : i32
    return %c0_i32, %c0_i32_0 : i32, i32
  }
  func.func @transform_7(%arg0: i32) -> (i32, i32) {
    %c0_i32 = arith.constant 0 : i32
    %c0_i32_0 = arith.constant 0 : i32
    return %c0_i32, %arg0 : i32, i32
  }
}

</mosaic_0001>

<llo_original>
// kernel: _forward.1
$region0: #{_forward.1}
  #allocation0 [shape = 'u32[]', space=smem, size = 0x4, offset = 0x4, fixed_abs, tag = 'smem constant byte address 0x4 - core index']
  #allocation1 [shape = 'u32[72,128]{1,0:T(1,128)}', space=vmem, size = 0x9000, scoped, tag = 'internal scratch']
  #allocation2 [shape = 'f32[1,1]{1,0:T(1,128)S(6)}', space=smem, size = 0x200, scoped, tag = 'scoped memory for _forward.1']
  %s0 = inlined_call_operand.vmem [shape: bf16[512,48], index: 0, kind: input, shape index: {}]
  %s1 = inlined_call_operand.vmem [shape: s32[512,1], index: 1, kind: input, shape index: {}]
  %s2 = inlined_call_operand.vmem [shape: bf16[128,48], index: 2, kind: input, shape index: {}]
  %s3 = inlined_call_operand.vmem [shape: bf16[64,128], index: 3, kind: input, shape index: {}]
  %s4 = inlined_call_operand.vmem [shape: f32[64,1], index: 4, kind: input, shape index: {}]
  %s5 = inlined_call_operand.vmem [shape: f32[64,1], index: 5, kind: input, shape index: {}]
  %s6 = inlined_call_operand.<no memory space> [shape: f32[1,1], index: 6, kind: input, shape index: {}]
  %s7 = inlined_call_operand.vmem [shape: f32[1,512], index: 7, kind: output, shape index: {}]
  %s8 = sld [smem:[#allocation0]]
  $region61: #{_forward.1} parent=0
    _
  %s10 = ssub.s32 1, %s8
  %s11 = scalar_select 0, %s10, %s8
  %12 = sst [smem:[#allocation2]] %s6
  loop: start=0, step=1, limit=4
  $region2: #{_forward.1} parent=0 // loop_pre_header
    _
  $region3: #{_forward.1} parent=0 // loop_header
    %s14 = sphi 0, %s18
    %p15 = scmp.ge.s32.totalorder %s14, 4
    %s24 = sphi 0, %s26
    %s27 = sphi 0, %s24
    %s28 = sphi 0, %s27
    %s44 = sphi 0, %s28
    %s50 = sphi 0, %s52
    %s53 = sphi 0, %s50
    %s54 = sphi 0, %s53
    %s70 = sphi 0, %s54
    %s74 = sphi 0, %s74
    %s76 = sphi 0, %s74
    %s77 = sphi 0, %s76
    %s91 = sphi 0, %s77
    %s95 = sphi 0, %s95
    %s97 = sphi 0, %s95
    %s98 = sphi 0, %s97
    %s112 = sphi 0, %s98
    %s116 = sphi 0, %s116
    %s118 = sphi 0, %s116
    %s119 = sphi 0, %s118
    %s133 = sphi 0, %s119
    %s137 = sphi 0, %s137
    %s139 = sphi 0, %s137
    %s140 = sphi 0, %s139
    %s154 = sphi 0, %s140
    %s158 = sphi 0, %s158
    %s160 = sphi 0, %s158
    %s161 = sphi 0, %s160
    %s175 = sphi 0, %s161
    %s181 = sphi 0, %s183
    %s184 = sphi 0, %s181
    %s185 = sphi 0, %s184
    %s201 = sphi 0, %s185
  $region4: #{_forward.1} parent=0 // loop_header_branch
    %17 = sbr.rel (%p15) target = $region8
  $region5: #{_forward.1} parent=0 // loop_body
    %s19 = ssub.s32 %s14, 1
    %s20 = ssub.s32 %s14, 2
    %s21 = sadd.s32 %s14, 1
    %s22 = ssub.s32 %s14, %s21
    %p23 = scmp.eq.s32.totalorder %s22, 0
    %s25 = sadd.s32 %s24, 1
    %s26 = scalar_select %p23, %s24, %s25
    %p29 = pneg %p23
    %p30 = scmp.eq.s32.totalorder %s14, 1
    %p31 = por %p29, %p30
    %p32 = scmp.ne.s32.totalorder %s24, %s27
    %p33 = scmp.eq.s32.totalorder %s14, 0
    %p34 = por %p32, %p33
    %p35 = scmp.ne.s32.totalorder %s24, %s27
    %p36 = scmp.eq.s32.totalorder %s19, 1
    %p37 = por %p35, %p36
    %p38 = scmp.ne.s32.totalorder %s27, %s28
    %p39 = scmp.eq.s32.totalorder %s19, 0
    %p40 = por %p38, %p39
    %p41 = scmp.ne.s32.totalorder %s27, %s28
    %p42 = scmp.eq.s32.totalorder %s20, 1
    %p43 = por %p41, %p42
    %p45 = scmp.ne.s32.totalorder %s28, %s44
    %p46 = scmp.eq.s32.totalorder %s20, 0
    %p47 = por %p45, %p46
    %s48 = ssub.s32 %s14, %s21
    %p49 = scmp.eq.s32.totalorder %s48, 0
    %s51 = sadd.s32 %s50, 1
    %s52 = scalar_select %p49, %s50, %s51
    %p55 = pneg %p49
    %p56 = scmp.eq.s32.totalorder %s14, 1
    %p57 = por %p55, %p56
    %p58 = scmp.ne.s32.totalorder %s50, %s53
    %p59 = scmp.eq.s32.totalorder %s14, 0
    %p60 = por %p58, %p59
    %p61 = scmp.ne.s32.totalorder %s50, %s53
    %p62 = scmp.eq.s32.totalorder %s19, 1
    %p63 = por %p61, %p62
    %p64 = scmp.ne.s32.totalorder %s53, %s54
    %p65 = scmp.eq.s32.totalorder %s19, 0
    %p66 = por %p64, %p65
    %p67 = scmp.ne.s32.totalorder %s53, %s54
    %p68 = scmp.eq.s32.totalorder %s20, 1
    %p69 = por %p67, %p68
    %p71 = scmp.ne.s32.totalorder %s54, %s70
    %p72 = scmp.eq.s32.totalorder %s20, 0
    %p73 = por %p71, %p72
    %s75 = sadd.s32 %s74, 1
    %p78 = scmp.eq.s32.totalorder %s14, 1
    %p79 = scmp.ne.s32.totalorder %s74, %s76
    %p80 = scmp.eq.s32.totalorder %s14, 0
    %p81 = por %p79, %p80
    %p82 = scmp.ne.s32.totalorder %s74, %s76
    %p83 = scmp.eq.s32.totalorder %s19, 1
    %p84 = por %p82, %p83
    %p85 = scmp.ne.s32.totalorder %s76, %s77
    %p86 = scmp.eq.s32.totalorder %s19, 0
    %p87 = por %p85, %p86
    %p88 = scmp.ne.s32.totalorder %s76, %s77
    %p89 = scmp.eq.s32.totalorder %s20, 1
    %p90 = por %p88, %p89
    %p92 = scmp.ne.s32.totalorder %s77, %s91
    %p93 = scmp.eq.s32.totalorder %s20, 0
    %p94 = por %p92, %p93
    %s96 = sadd.s32 %s95, 1
    %p99 = scmp.eq.s32.totalorder %s14, 1
    %p100 = scmp.ne.s32.totalorder %s95, %s97
    %p101 = scmp.eq.s32.totalorder %s14, 0
    %p102 = por %p100, %p101
    %p103 = scmp.ne.s32.totalorder %s95, %s97
    %p104 = scmp.eq.s32.totalorder %s19, 1
    %p105 = por %p103, %p104
    %p106 = scmp.ne.s32.totalorder %s97, %s98
    %p107 = scmp.eq.s32.totalorder %s19, 0
    %p108 = por %p106, %p107
    %p109 = scmp.ne.s32.totalorder %s97, %s98
    %p110 = scmp.eq.s32.totalorder %s20, 1
    %p111 = por %p109, %p110
    %p113 = scmp.ne.s32.totalorder %s98, %s112
    %p114 = scmp.eq.s32.totalorder %s20, 0
    %p115 = por %p113, %p114
    %s117 = sadd.s32 %s116, 1
    %p120 = scmp.eq.s32.totalorder %s14, 1
    %p121 = scmp.ne.s32.totalorder %s116, %s118
    %p122 = scmp.eq.s32.totalorder %s14, 0
    %p123 = por %p121, %p122
    %p124 = scmp.ne.s32.totalorder %s116, %s118
    %p125 = scmp.eq.s32.totalorder %s19, 1
    %p126 = por %p124, %p125
    %p127 = scmp.ne.s32.totalorder %s118, %s119
    %p128 = scmp.eq.s32.totalorder %s19, 0
    %p129 = por %p127, %p128
    %p130 = scmp.ne.s32.totalorder %s118, %s119
    %p131 = scmp.eq.s32.totalorder %s20, 1
    %p132 = por %p130, %p131
    %p134 = scmp.ne.s32.totalorder %s119, %s133
    %p135 = scmp.eq.s32.totalorder %s20, 0
    %p136 = por %p134, %p135
    %s138 = sadd.s32 %s137, 1
    %p141 = scmp.eq.s32.totalorder %s14, 1
    %p142 = scmp.ne.s32.totalorder %s137, %s139
    %p143 = scmp.eq.s32.totalorder %s14, 0
    %p144 = por %p142, %p143
    %p145 = scmp.ne.s32.totalorder %s137, %s139
    %p146 = scmp.eq.s32.totalorder %s19, 1
    %p147 = por %p145, %p146
    %p148 = scmp.ne.s32.totalorder %s139, %s140
    %p149 = scmp.eq.s32.totalorder %s19, 0
    %p150 = por %p148, %p149
    %p151 = scmp.ne.s32.totalorder %s139, %s140
    %p152 = scmp.eq.s32.totalorder %s20, 1
    %p153 = por %p151, %p152
    %p155 = scmp.ne.s32.totalorder %s140, %s154
    %p156 = scmp.eq.s32.totalorder %s20, 0
    %p157 = por %p155, %p156
    %s159 = sadd.s32 %s158, 1
    %p162 = scmp.eq.s32.totalorder %s14, 1
    %p163 = scmp.ne.s32.totalorder %s158, %s160
    %p164 = scmp.eq.s32.totalorder %s14, 0
    %p165 = por %p163, %p164
    %p166 = scmp.ne.s32.totalorder %s158, %s160
    %p167 = scmp.eq.s32.totalorder %s19, 1
    %p168 = por %p166, %p167
    %p169 = scmp.ne.s32.totalorder %s160, %s161
    %p170 = scmp.eq.s32.totalorder %s19, 0
    %p171 = por %p169, %p170
    %p172 = scmp.ne.s32.totalorder %s160, %s161
    %p173 = scmp.eq.s32.totalorder %s20, 1
    %p174 = por %p172, %p173
    %p176 = scmp.ne.s32.totalorder %s161, %s175
    %p177 = scmp.eq.s32.totalorder %s20, 0
    %p178 = por %p176, %p177
    %s179 = ssub.s32 %s14, %s21
    %p180 = scmp.eq.s32.totalorder %s179, 0
    %s182 = sadd.s32 %s181, 1
    %s183 = scalar_select %p180, %s181, %s182
    %p186 = pneg %p180
    %p187 = scmp.eq.s32.totalorder %s14, 1
    %p188 = por %p186, %p187
    %p189 = scmp.ne.s32.totalorder %s181, %s184
    %p190 = scmp.eq.s32.totalorder %s14, 0
    %p191 = por %p189, %p190
    %p192 = scmp.ne.s32.totalorder %s181, %s184
    %p193 = scmp.eq.s32.totalorder %s19, 1
    %p194 = por %p192, %p193
    %p195 = scmp.ne.s32.totalorder %s184, %s185
    %p196 = scmp.eq.s32.totalorder %s19, 0
    %p197 = por %p195, %p196
    %p198 = scmp.ne.s32.totalorder %s184, %s185
    %p199 = scmp.eq.s32.totalorder %s20, 1
    %p200 = por %p198, %p199
    %p202 = scmp.ne.s32.totalorder %s185, %s201
    %p203 = scmp.eq.s32.totalorder %s20, 0
    %p204 = por %p202, %p203
    %p205 = scmp.le.s32.totalorder 1, %s14
    %p206 = scmp.lt.s32.totalorder %s14, 3
    %p207 = pnand %p205, %p206
    %p208 = pneg %p207
    // Predicated region
    $region9: #{_forward.1} parent=5 // pred_check
      _
    $region10: #{_forward.1} parent=5 // pred_check_branch
      %210 = sbr.rel (%p207) target = $region12
    $region11: #{_forward.1} parent=5 // pred_region
      %s211 = ssub.s32 %s14, 1
      // Predicated region
      $region13: #{_forward.1} parent=11 // pred_check
        %p212 = pneg %p87
      $region14: #{_forward.1} parent=11 // pred_check_branch
        %214 = sbr.rel (%p212) target = $region16
      $region15: #{_forward.1} parent=11 // pred_region
        _
      $region16: #{_forward.1} parent=11 // pred_fallthru
        _
      // Predicated region
      $region17: #{_forward.1} parent=11 // pred_check
        %p215 = pneg %p108
      $region18: #{_forward.1} parent=11 // pred_check_branch
        %217 = sbr.rel (%p215) target = $region20
      $region19: #{_forward.1} parent=11 // pred_region
        _
      $region20: #{_forward.1} parent=11 // pred_fallthru
        _
      // Predicated region
      $region21: #{_forward.1} parent=11 // pred_check
        %p218 = pneg %p129
      $region22: #{_forward.1} parent=11 // pred_check_branch
        %220 = sbr.rel (%p218) target = $region24
      $region23: #{_forward.1} parent=11 // pred_region
        _
      $region24: #{_forward.1} parent=11 // pred_fallthru
        _
      // Predicated region
      $region25: #{_forward.1} parent=11 // pred_check
        %p221 = pneg %p150
      $region26: #{_forward.1} parent=11 // pred_check_branch
        %223 = sbr.rel (%p221) target = $region28
      $region27: #{_forward.1} parent=11 // pred_region
        _
      $region28: #{_forward.1} parent=11 // pred_fallthru
        _
      // Predicated region
      $region29: #{_forward.1} parent=11 // pred_check
        %p224 = pneg %p171
      $region30: #{_forward.1} parent=11 // pred_check_branch
        %226 = sbr.rel (%p224) target = $region32
      $region31: #{_forward.1} parent=11 // pred_region
        _
      $region32: #{_forward.1} parent=11 // pred_fallthru
        _
    $region12: #{_forward.1} parent=5 // pred_fallthru
      _
    %p227 = scmp.lt.s32.totalorder %s14, 2
    // Predicated region
    $region33: #{_forward.1} parent=5 // pred_check
      %p228 = pneg %p227
    $region34: #{_forward.1} parent=5 // pred_check_branch
      %230 = sbr.rel (%p228) target = $region36
    $region35: #{_forward.1} parent=5 // pred_region
      // Predicated region
      $region37: #{_forward.1} parent=35 // pred_check
        %p231 = pneg %p34
      $region38: #{_forward.1} parent=35 // pred_check_branch
        %233 = sbr.rel (%p231) target = $region40
      $region39: #{_forward.1} parent=35 // pred_region
        %s234 = smul.u32 32, %s14
        %p235 = scmp.lt.s32.totalorder %s234, 63
        %s236 = scalar_select %p235, %s234, 63
        %s237 = smul.addr %s236, 4
        %s238 = scalar_lea.vmem %s0, %s237
        %s239 = smul.u32 32, %s14
      $region40: #{_forward.1} parent=35 // pred_fallthru
        _
      // Predicated region
      $region41: #{_forward.1} parent=35 // pred_check
        %p240 = pneg %p60
      $region42: #{_forward.1} parent=35 // pred_check_branch
        %242 = sbr.rel (%p240) target = $region44
      $region43: #{_forward.1} parent=35 // pred_region
        %s243 = smul.u32 32, %s14
        %p244 = scmp.lt.s32.totalorder %s243, 63
        %s245 = scalar_select %p244, %s243, 63
        %s246 = smul.addr %s245, 8
        %s247 = scalar_lea.vmem %s1, %s246
        %s248 = smul.u32 32, %s14
      $region44: #{_forward.1} parent=35 // pred_fallthru
        _
    $region36: #{_forward.1} parent=5 // pred_fallthru
      _
    %p249 = scmp.le.s32.totalorder 1, %s14
    %p250 = scmp.lt.s32.totalorder %s14, 3
    %p251 = pnand %p249, %p250
    %p252 = pneg %p251
    // Predicated region
    $region45: #{_forward.1} parent=5 // pred_check
      _
    $region46: #{_forward.1} parent=5 // pred_check_branch
      %254 = sbr.rel (%p251) target = $region48
    $region47: #{_forward.1} parent=5 // pred_region
      %s255 = ssub.s32 %s14, 1
      %s256 = smul.u32 32, %s19
      %p257 = scmp.lt.s32.totalorder %s256, 63
      %s258 = scalar_select %p257, %s256, 63
      %s259 = smul.addr %s258, 4
      %s260 = scalar_lea.vmem %s0, %s259
      %p261 = pneg %p40
      %p262 = pneg %p37
      %s263 = smul.u32 32, %s19
      %p264 = scmp.lt.s32.totalorder %s263, 63
      %s265 = scalar_select %p264, %s263, 63
      %s266 = smul.addr %s265, 8
      %s267 = scalar_lea.vmem %s1, %s266
      %p268 = pneg %p66
      %p269 = pneg %p63
      %p270 = pneg %p87
      %p271 = pneg %p84
      %p272 = pneg %p108
      %p273 = pneg %p105
      %p274 = pneg %p129
      %p275 = pneg %p126
      %p276 = pneg %p150
      %p277 = pneg %p147
      %p278 = pneg %p171
      %p279 = pneg %p168
      %p280 = pneg %p197
      %p281 = pneg %p194
      %s282 = smul.u32 2, %s19
      %p283 = scmp.lt.s32.totalorder %s282, 3
      %s284 = scalar_select %p283, %s282, 3
      %s285 = scalar_lea.vmem %s7, %s284
      %s286 = smul.u32 32, %s19
      %p287 = scmp.lt.s32.totalorder %s286, 63
      %s288 = scalar_select %p287, %s286, 63
      %s289 = smul.addr %s288, 4
      %s290 = scalar_lea.vmem %s0, %s289
      %s291 = smul.u32 32, %s19
      %s292 = smul.u32 32, %s19
      %p293 = scmp.lt.s32.totalorder %s292, 63
      %s294 = scalar_select %p293, %s292, 63
      %s295 = smul.addr %s294, 8
      %s296 = scalar_lea.vmem %s1, %s295
      %s297 = smul.u32 32, %s19
      %s298 = smul.u32 2, %s19
      %p299 = scmp.lt.s32.totalorder %s298, 3
      %s300 = scalar_select %p299, %s298, 3
      %s301 = scalar_lea.vmem %s7, %s300
      %s302 = smul.u32 2, %s19
      %v303 = vlaneseq
      %v304 = vand.u32 %v303, 127
      %v305 = vld [vmem:[%s296] sm:$0xff]
      %v306 = vld [vmem:[%s296 + $0x8] sm:$0xff]
      %v307 = vld [vmem:[%s296 + $0x10] sm:$0xff]
      %v308 = vld [vmem:[%s296 + $0x18] sm:$0xff]
      %v309 = vld [vmem:[%s296 + $0x20] sm:$0xff]
      %v310 = vld [vmem:[%s296 + $0x28] sm:$0xff]
      %v311 = vld [vmem:[%s296 + $0x30] sm:$0xff]
      %v312 = vld [vmem:[%s296 + $0x38] sm:$0xff]
      %v313 = vld [vmem:[%s296 + $0x40] sm:$0xff]
      %v314 = vld [vmem:[%s296 + $0x48] sm:$0xff]
      %v315 = vld [vmem:[%s296 + $0x50] sm:$0xff]
      %v316 = vld [vmem:[%s296 + $0x58] sm:$0xff]
      %v317 = vld [vmem:[%s296 + $0x60] sm:$0xff]
      %v318 = vld [vmem:[%s296 + $0x68] sm:$0xff]
      %v319 = vld [vmem:[%s296 + $0x70] sm:$0xff]
      %v320 = vld [vmem:[%s296 + $0x78] sm:$0xff]
      %v321 = vld [vmem:[%s296 + $0x80] sm:$0xff]
      %v322 = vld [vmem:[%s296 + $0x88] sm:$0xff]
      %v323 = vld [vmem:[%s296 + $0x90] sm:$0xff]
      %v324 = vld [vmem:[%s296 + $0x98] sm:$0xff]
      %v325 = vld [vmem:[%s296 + $0xa0] sm:$0xff]
      %v326 = vld [vmem:[%s296 + $0xa8] sm:$0xff]
      %v327 = vld [vmem:[%s296 + $0xb0] sm:$0xff]
      %v328 = vld [vmem:[%s296 + $0xb8] sm:$0xff]
      %v329 = vld [vmem:[%s296 + $0xc0] sm:$0xff]
      %v330 = vld [vmem:[%s296 + $0xc8] sm:$0xff]
      %v331 = vld [vmem:[%s296 + $0xd0] sm:$0xff]
      %v332 = vld [vmem:[%s296 + $0xd8] sm:$0xff]
      %v333 = vld [vmem:[%s296 + $0xe0] sm:$0xff]
      %v334 = vld [vmem:[%s296 + $0xe8] sm:$0xff]
      %v335 = vld [vmem:[%s296 + $0xf0] sm:$0xff]
      %v336 = vld [vmem:[%s296 + $0xf8] sm:$0xff]
      %v337 = vadd.s32 %v305, 32
      %v338 = vadd.s32 %v306, 32
      %v339 = vadd.s32 %v307, 32
      %v340 = vadd.s32 %v308, 32
      %v341 = vadd.s32 %v309, 32
      %v342 = vadd.s32 %v310, 32
      %v343 = vadd.s32 %v311, 32
      %v344 = vadd.s32 %v312, 32
      %v345 = vadd.s32 %v313, 32
      %v346 = vadd.s32 %v314, 32
      %v347 = vadd.s32 %v315, 32
      %v348 = vadd.s32 %v316, 32
      %v349 = vadd.s32 %v317, 32
      %v350 = vadd.s32 %v318, 32
      %v351 = vadd.s32 %v319, 32
      %v352 = vadd.s32 %v320, 32
      %v353 = vadd.s32 %v321, 32
      %v354 = vadd.s32 %v322, 32
      %v355 = vadd.s32 %v323, 32
      %v356 = vadd.s32 %v324, 32
      %v357 = vadd.s32 %v325, 32
      %v358 = vadd.s32 %v326, 32
      %v359 = vadd.s32 %v327, 32
      %v360 = vadd.s32 %v328, 32
      %v361 = vadd.s32 %v329, 32
      %v362 = vadd.s32 %v330, 32
      %v363 = vadd.s32 %v331, 32
      %v364 = vadd.s32 %v332, 32
      %v365 = vadd.s32 %v333, 32
      %v366 = vadd.s32 %v334, 32
      %v367 = vadd.s32 %v335, 32
      %v368 = vadd.s32 %v336, 32
      %369 = vset.pattern.permute.xlu0 0
      %370 = vperm.xlu0 %369, %v337
      %v371 = vpop.permute.xlu0 %370
      %372 = vset.pattern.permute.xlu0 0
      %373 = vperm.xlu0 %372, %v338
      %v374 = vpop.permute.xlu0 %373
      %375 = vset.pattern.permute.xlu0 0
      %376 = vperm.xlu0 %375, %v339
      %v377 = vpop.permute.xlu0 %376
      %378 = vset.pattern.permute.xlu0 0
      %379 = vperm.xlu0 %378, %v340
      %v380 = vpop.permute.xlu0 %379
      %381 = vset.pattern.permute.xlu0 0
      %382 = vperm.xlu0 %381, %v341
      %v383 = vpop.permute.xlu0 %382
      %384 = vset.pattern.permute.xlu0 0
      %385 = vperm.xlu0 %384, %v342
      %v386 = vpop.permute.xlu0 %385
      %387 = vset.pattern.permute.xlu0 0
      %388 = vperm.xlu0 %387, %v343
      %v389 = vpop.permute.xlu0 %388
      %390 = vset.pattern.permute.xlu0 0
      %391 = vperm.xlu0 %390, %v344
      %v392 = vpop.permute.xlu0 %391
      %393 = vset.pattern.permute.xlu0 0
      %394 = vperm.xlu0 %393, %v345
      %v395 = vpop.permute.xlu0 %394
      %396 = vset.pattern.permute.xlu0 0
      %397 = vperm.xlu0 %396, %v346
      %v398 = vpop.permute.xlu0 %397
      %399 = vset.pattern.permute.xlu0 0
      %400 = vperm.xlu0 %399, %v347
      %v401 = vpop.permute.xlu0 %400
      %402 = vset.pattern.permute.xlu0 0
      %403 = vperm.xlu0 %402, %v348
      %v404 = vpop.permute.xlu0 %403
      %405 = vset.pattern.permute.xlu0 0
      %406 = vperm.xlu0 %405, %v349
      %v407 = vpop.permute.xlu0 %406
      %408 = vset.pattern.permute.xlu0 0
      %409 = vperm.xlu0 %408, %v350
      %v410 = vpop.permute.xlu0 %409
      %411 = vset.pattern.permute.xlu0 0
      %412 = vperm.xlu0 %411, %v351
      %v413 = vpop.permute.xlu0 %412
      %414 = vset.pattern.permute.xlu0 0
      %415 = vperm.xlu0 %414, %v352
      %v416 = vpop.permute.xlu0 %415
      %417 = vset.pattern.permute.xlu0 0
      %418 = vperm.xlu0 %417, %v353
      %v419 = vpop.permute.xlu0 %418
      %420 = vset.pattern.permute.xlu0 0
      %421 = vperm.xlu0 %420, %v354
      %v422 = vpop.permute.xlu0 %421
      %423 = vset.pattern.permute.xlu0 0
      %424 = vperm.xlu0 %423, %v355
      %v425 = vpop.permute.xlu0 %424
      %426 = vset.pattern.permute.xlu0 0
      %427 = vperm.xlu0 %426, %v356
      %v428 = vpop.permute.xlu0 %427
      %429 = vset.pattern.permute.xlu0 0
      %430 = vperm.xlu0 %429, %v357
      %v431 = vpop.permute.xlu0 %430
      %432 = vset.pattern.permute.xlu0 0
      %433 = vperm.xlu0 %432, %v358
      %v434 = vpop.permute.xlu0 %433
      %435 = vset.pattern.permute.xlu0 0
      %436 = vperm.xlu0 %435, %v359
      %v437 = vpop.permute.xlu0 %436
      %438 = vset.pattern.permute.xlu0 0
      %439 = vperm.xlu0 %438, %v360
      %v440 = vpop.permute.xlu0 %439
      %441 = vset.pattern.permute.xlu0 0
      %442 = vperm.xlu0 %441, %v361
      %v443 = vpop.permute.xlu0 %442
      %444 = vset.pattern.permute.xlu0 0
      %445 = vperm.xlu0 %444, %v362
      %v446 = vpop.permute.xlu0 %445
      %447 = vset.pattern.permute.xlu0 0
      %448 = vperm.xlu0 %447, %v363
      %v449 = vpop.permute.xlu0 %448
      %450 = vset.pattern.permute.xlu0 0
      %451 = vperm.xlu0 %450, %v364
      %v452 = vpop.permute.xlu0 %451
      %453 = vset.pattern.permute.xlu0 0
      %454 = vperm.xlu0 %453, %v365
      %v455 = vpop.permute.xlu0 %454
      %456 = vset.pattern.permute.xlu0 0
      %457 = vperm.xlu0 %456, %v366
      %v458 = vpop.permute.xlu0 %457
      %459 = vset.pattern.permute.xlu0 0
      %460 = vperm.xlu0 %459, %v367
      %v461 = vpop.permute.xlu0 %460
      %462 = vset.pattern.permute.xlu0 0
      %463 = vperm.xlu0 %462, %v368
      %v464 = vpop.permute.xlu0 %463
      %vm465 = vcmp.eq.s32.totalorder %v304, %v371
      %vm466 = vcmp.eq.s32.totalorder %v304, %v374
      %vm467 = vcmp.eq.s32.totalorder %v304, %v377
      %vm468 = vcmp.eq.s32.totalorder %v304, %v380
      %vm469 = vcmp.eq.s32.totalorder %v304, %v383
      %vm470 = vcmp.eq.s32.totalorder %v304, %v386
      %vm471 = vcmp.eq.s32.totalorder %v304, %v389
      %vm472 = vcmp.eq.s32.totalorder %v304, %v392
      %vm473 = vcmp.eq.s32.totalorder %v304, %v395
      %vm474 = vcmp.eq.s32.totalorder %v304, %v398
      %vm475 = vcmp.eq.s32.totalorder %v304, %v401
      %vm476 = vcmp.eq.s32.totalorder %v304, %v404
      %vm477 = vcmp.eq.s32.totalorder %v304, %v407
      %vm478 = vcmp.eq.s32.totalorder %v304, %v410
      %vm479 = vcmp.eq.s32.totalorder %v304, %v413
      %vm480 = vcmp.eq.s32.totalorder %v304, %v416
      %vm481 = vcmp.eq.s32.totalorder %v304, %v419
      %vm482 = vcmp.eq.s32.totalorder %v304, %v422
      %vm483 = vcmp.eq.s32.totalorder %v304, %v425
      %vm484 = vcmp.eq.s32.totalorder %v304, %v428
      %vm485 = vcmp.eq.s32.totalorder %v304, %v431
      %vm486 = vcmp.eq.s32.totalorder %v304, %v434
      %vm487 = vcmp.eq.s32.totalorder %v304, %v437
      %vm488 = vcmp.eq.s32.totalorder %v304, %v440
      %vm489 = vcmp.eq.s32.totalorder %v304, %v443
      %vm490 = vcmp.eq.s32.totalorder %v304, %v446
      %vm491 = vcmp.eq.s32.totalorder %v304, %v449
      %vm492 = vcmp.eq.s32.totalorder %v304, %v452
      %vm493 = vcmp.eq.s32.totalorder %v304, %v455
      %vm494 = vcmp.eq.s32.totalorder %v304, %v458
      %vm495 = vcmp.eq.s32.totalorder %v304, %v461
      %vm496 = vcmp.eq.s32.totalorder %v304, %v464
      %v497 = vsel %vm465, 1, 0
      %v498 = vsel %vm466, 1, 0
      %v499 = vsel %vm467, 1, 0
      %v500 = vsel %vm468, 1, 0
      %v501 = vsel %vm469, 1, 0
      %v502 = vsel %vm470, 1, 0
      %v503 = vsel %vm471, 1, 0
      %v504 = vsel %vm472, 1, 0
      %v505 = vsel %vm473, 1, 0
      %v506 = vsel %vm474, 1, 0
      %v507 = vsel %vm475, 1, 0
      %v508 = vsel %vm476, 1, 0
      %v509 = vsel %vm477, 1, 0
      %v510 = vsel %vm478, 1, 0
      %v511 = vsel %vm479, 1, 0
      %v512 = vsel %vm480, 1, 0
      %v513 = vsel %vm481, 1, 0
      %v514 = vsel %vm482, 1, 0
      %v515 = vsel %vm483, 1, 0
      %v516 = vsel %vm484, 1, 0
      %v517 = vsel %vm485, 1, 0
      %v518 = vsel %vm486, 1, 0
      %v519 = vsel %vm487, 1, 0
      %v520 = vsel %vm488, 1, 0
      %v521 = vsel %vm489, 1, 0
      %v522 = vsel %vm490, 1, 0
      %v523 = vsel %vm491, 1, 0
      %v524 = vsel %vm492, 1, 0
      %v525 = vsel %vm493, 1, 0
      %v526 = vsel %vm494, 1, 0
      %v527 = vsel %vm495, 1, 0
      %v528 = vsel %vm496, 1, 0
      %v529 = vcvt.s32.f32 %v497
      %v530 = vcvt.s32.f32 %v498
      %v531 = vcvt.s32.f32 %v499
      %v532 = vcvt.s32.f32 %v500
      %v533 = vcvt.s32.f32 %v501
      %v534 = vcvt.s32.f32 %v502
      %v535 = vcvt.s32.f32 %v503
      %v536 = vcvt.s32.f32 %v504
      %v537 = vcvt.s32.f32 %v505
      %v538 = vcvt.s32.f32 %v506
      %v539 = vcvt.s32.f32 %v507
      %v540 = vcvt.s32.f32 %v508
      %v541 = vcvt.s32.f32 %v509
      %v542 = vcvt.s32.f32 %v510
      %v543 = vcvt.s32.f32 %v511
      %v544 = vcvt.s32.f32 %v512
      %v545 = vcvt.s32.f32 %v513
      %v546 = vcvt.s32.f32 %v514
      %v547 = vcvt.s32.f32 %v515
      %v548 = vcvt.s32.f32 %v516
      %v549 = vcvt.s32.f32 %v517
      %v550 = vcvt.s32.f32 %v518
      %v551 = vcvt.s32.f32 %v519
      %v552 = vcvt.s32.f32 %v520
      %v553 = vcvt.s32.f32 %v521
      %v554 = vcvt.s32.f32 %v522
      %v555 = vcvt.s32.f32 %v523
      %v556 = vcvt.s32.f32 %v524
      %v557 = vcvt.s32.f32 %v525
      %v558 = vcvt.s32.f32 %v526
      %v559 = vcvt.s32.f32 %v527
      %v560 = vcvt.s32.f32 %v528
      %v561 = vpack.c.bf16 %v529, %v529
      %v562 = vpack.c.bf16 %v530, %v530
      %v563 = vpack.c.bf16 %v531, %v531
      %v564 = vpack.c.bf16 %v532, %v532
      %v565 = vpack.c.bf16 %v533, %v533
      %v566 = vpack.c.bf16 %v534, %v534
      %v567 = vpack.c.bf16 %v535, %v535
      %v568 = vpack.c.bf16 %v536, %v536
      %v569 = vpack.c.bf16 %v537, %v537
      %v570 = vpack.c.bf16 %v538, %v538
      %v571 = vpack.c.bf16 %v539, %v539
      %v572 = vpack.c.bf16 %v540, %v540
      %v573 = vpack.c.bf16 %v541, %v541
      %v574 = vpack.c.bf16 %v542, %v542
      %v575 = vpack.c.bf16 %v543, %v543
      %v576 = vpack.c.bf16 %v544, %v544
      %v577 = vpack.c.bf16 %v545, %v545
      %v578 = vpack.c.bf16 %v546, %v546
      %v579 = vpack.c.bf16 %v547, %v547
      %v580 = vpack.c.bf16 %v548, %v548
      %v581 = vpack.c.bf16 %v549, %v549
      %v582 = vpack.c.bf16 %v550, %v550
      %v583 = vpack.c.bf16 %v551, %v551
      %v584 = vpack.c.bf16 %v552, %v552
      %v585 = vpack.c.bf16 %v553, %v553
      %v586 = vpack.c.bf16 %v554, %v554
      %v587 = vpack.c.bf16 %v555, %v555
      %v588 = vpack.c.bf16 %v556, %v556
      %v589 = vpack.c.bf16 %v557, %v557
      %v590 = vpack.c.bf16 %v558, %v558
      %v591 = vpack.c.bf16 %v559, %v559
      %v592 = vpack.c.bf16 %v560, %v560
      %v593 = vld [vmem:[%s290] sm:$0xf]
      %v594 = vld [vmem:[%s290 + $0x4] sm:$0xf]
      %v595 = vld [vmem:[%s290 + $0x8] sm:$0xf]
      %v596 = vld [vmem:[%s290 + $0xc] sm:$0xf]
      %v597 = vld [vmem:[%s290 + $0x10] sm:$0xf]
      %v598 = vld [vmem:[%s290 + $0x14] sm:$0xf]
      %v599 = vld [vmem:[%s290 + $0x18] sm:$0xf]
      %v600 = vld [vmem:[%s290 + $0x1c] sm:$0xf]
      %v601 = vld [vmem:[%s290 + $0x20] sm:$0xf]
      %v602 = vld [vmem:[%s290 + $0x24] sm:$0xf]
      %v603 = vld [vmem:[%s290 + $0x28] sm:$0xf]
      %v604 = vld [vmem:[%s290 + $0x2c] sm:$0xf]
      %v605 = vld [vmem:[%s290 + $0x30] sm:$0xf]
      %v606 = vld [vmem:[%s290 + $0x34] sm:$0xf]
      %v607 = vld [vmem:[%s290 + $0x38] sm:$0xf]
      %v608 = vld [vmem:[%s290 + $0x3c] sm:$0xf]
      %v609 = vld [vmem:[%s290 + $0x40] sm:$0xf]
      %v610 = vld [vmem:[%s290 + $0x44] sm:$0xf]
      %v611 = vld [vmem:[%s290 + $0x48] sm:$0xf]
      %v612 = vld [vmem:[%s290 + $0x4c] sm:$0xf]
      %v613 = vld [vmem:[%s290 + $0x50] sm:$0xf]
      %v614 = vld [vmem:[%s290 + $0x54] sm:$0xf]
      %v615 = vld [vmem:[%s290 + $0x58] sm:$0xf]
      %v616 = vld [vmem:[%s290 + $0x5c] sm:$0xf]
      %v617 = vld [vmem:[%s290 + $0x60] sm:$0xf]
      %v618 = vld [vmem:[%s290 + $0x64] sm:$0xf]
      %v619 = vld [vmem:[%s290 + $0x68] sm:$0xf]
      %v620 = vld [vmem:[%s290 + $0x6c] sm:$0xf]
      %v621 = vld [vmem:[%s290 + $0x70] sm:$0xf]
      %v622 = vld [vmem:[%s290 + $0x74] sm:$0xf]
      %v623 = vld [vmem:[%s290 + $0x78] sm:$0xf]
      %v624 = vld [vmem:[%s290 + $0x7c] sm:$0xf]
      %v625 = vunpack.c.l.bf16 %v593
      %v626 = vunpack.c.l.bf16 %v594
      %v627 = vunpack.c.l.bf16 %v595
      %v628 = vunpack.c.l.bf16 %v596
      %v629 = vunpack.c.l.bf16 %v597
      %v630 = vunpack.c.l.bf16 %v598
      %v631 = vunpack.c.l.bf16 %v599
      %v632 = vunpack.c.l.bf16 %v600
      %v633 = vunpack.c.l.bf16 %v601
      %v634 = vunpack.c.l.bf16 %v602
      %v635 = vunpack.c.l.bf16 %v603
      %v636 = vunpack.c.l.bf16 %v604
      %v637 = vunpack.c.l.bf16 %v605
      %v638 = vunpack.c.l.bf16 %v606
      %v639 = vunpack.c.l.bf16 %v607
      %v640 = vunpack.c.l.bf16 %v608
      %v641 = vunpack.c.l.bf16 %v609
      %v642 = vunpack.c.l.bf16 %v610
      %v643 = vunpack.c.l.bf16 %v611
      %v644 = vunpack.c.l.bf16 %v612
      %v645 = vunpack.c.l.bf16 %v613
      %v646 = vunpack.c.l.bf16 %v614
      %v647 = vunpack.c.l.bf16 %v615
      %v648 = vunpack.c.l.bf16 %v616
      %v649 = vunpack.c.l.bf16 %v617
      %v650 = vunpack.c.l.bf16 %v618
      %v651 = vunpack.c.l.bf16 %v619
      %v652 = vunpack.c.l.bf16 %v620
      %v653 = vunpack.c.l.bf16 %v621
      %v654 = vunpack.c.l.bf16 %v622
      %v655 = vunpack.c.l.bf16 %v623
      %v656 = vunpack.c.l.bf16 %v624
      %v657 = vunpack.c.l.bf16 %v561
      %v658 = vunpack.c.l.bf16 %v562
      %v659 = vunpack.c.l.bf16 %v563
      %v660 = vunpack.c.l.bf16 %v564
      %v661 = vunpack.c.l.bf16 %v565
      %v662 = vunpack.c.l.bf16 %v566
      %v663 = vunpack.c.l.bf16 %v567
      %v664 = vunpack.c.l.bf16 %v568
      %v665 = vunpack.c.l.bf16 %v569
      %v666 = vunpack.c.l.bf16 %v570
      %v667 = vunpack.c.l.bf16 %v571
      %v668 = vunpack.c.l.bf16 %v572
      %v669 = vunpack.c.l.bf16 %v573
      %v670 = vunpack.c.l.bf16 %v574
      %v671 = vunpack.c.l.bf16 %v575
      %v672 = vunpack.c.l.bf16 %v576
      %v673 = vunpack.c.l.bf16 %v577
      %v674 = vunpack.c.l.bf16 %v578
      %v675 = vunpack.c.l.bf16 %v579
      %v676 = vunpack.c.l.bf16 %v580
      %v677 = vunpack.c.l.bf16 %v581
      %v678 = vunpack.c.l.bf16 %v582
      %v679 = vunpack.c.l.bf16 %v583
      %v680 = vunpack.c.l.bf16 %v584
      %v681 = vunpack.c.l.bf16 %v585
      %v682 = vunpack.c.l.bf16 %v586
      %v683 = vunpack.c.l.bf16 %v587
      %v684 = vunpack.c.l.bf16 %v588
      %v685 = vunpack.c.l.bf16 %v589
      %v686 = vunpack.c.l.bf16 %v590
      %v687 = vunpack.c.l.bf16 %v591
      %v688 = vunpack.c.l.bf16 %v592
      %v689 = vadd.f32 %v625, %v657
      %v690 = vadd.f32 %v626, %v658
      %v691 = vadd.f32 %v627, %v659
      %v692 = vadd.f32 %v628, %v660
      %v693 = vadd.f32 %v629, %v661
      %v694 = vadd.f32 %v630, %v662
      %v695 = vadd.f32 %v631, %v663
      %v696 = vadd.f32 %v632, %v664
      %v697 = vadd.f32 %v633, %v665
      %v698 = vadd.f32 %v634, %v666
      %v699 = vadd.f32 %v635, %v667
      %v700 = vadd.f32 %v636, %v668
      %v701 = vadd.f32 %v637, %v669
      %v702 = vadd.f32 %v638, %v670
      %v703 = vadd.f32 %v639, %v671
      %v704 = vadd.f32 %v640, %v672
      %v705 = vadd.f32 %v641, %v673
      %v706 = vadd.f32 %v642, %v674
      %v707 = vadd.f32 %v643, %v675
      %v708 = vadd.f32 %v644, %v676
      %v709 = vadd.f32 %v645, %v677
      %v710 = vadd.f32 %v646, %v678
      %v711 = vadd.f32 %v647, %v679
      %v712 = vadd.f32 %v648, %v680
      %v713 = vadd.f32 %v649, %v681
      %v714 = vadd.f32 %v650, %v682
      %v715 = vadd.f32 %v651, %v683
      %v716 = vadd.f32 %v652, %v684
      %v717 = vadd.f32 %v653, %v685
      %v718 = vadd.f32 %v654, %v686
      %v719 = vadd.f32 %v655, %v687
      %v720 = vadd.f32 %v656, %v688
      %v721 = vpack.c.bf16 %v690, %v689
      %v722 = vpack.c.bf16 %v692, %v691
      %v723 = vpack.c.bf16 %v694, %v693
      %v724 = vpack.c.bf16 %v696, %v695
      %v725 = vpack.c.bf16 %v698, %v697
      %v726 = vpack.c.bf16 %v700, %v699
      %v727 = vpack.c.bf16 %v702, %v701
      %v728 = vpack.c.bf16 %v704, %v703
      %v729 = vpack.c.bf16 %v706, %v705
      %v730 = vpack.c.bf16 %v708, %v707
      %v731 = vpack.c.bf16 %v710, %v709
      %v732 = vpack.c.bf16 %v712, %v711
      %v733 = vpack.c.bf16 %v714, %v713
      %v734 = vpack.c.bf16 %v716, %v715
      %v735 = vpack.c.bf16 %v718, %v717
      %v736 = vpack.c.bf16 %v720, %v719
      %v737 = vld [vmem:[%s2] sm:$0xf]
      %v738 = vld [vmem:[%s2 + $0x4] sm:$0xf]
      %v739 = vld [vmem:[%s2 + $0x8] sm:$0xf]
      %v740 = vld [vmem:[%s2 + $0xc] sm:$0xf]
      %v741 = vld [vmem:[%s2 + $0x10] sm:$0xf]
      %v742 = vld [vmem:[%s2 + $0x14] sm:$0xf]
      %v743 = vld [vmem:[%s2 + $0x18] sm:$0xf]
      %v744 = vld [vmem:[%s2 + $0x1c] sm:$0xf]
      %v745 = vld [vmem:[%s2 + $0x20] sm:$0xf]
      %v746 = vld [vmem:[%s2 + $0x24] sm:$0xf]
      %v747 = vld [vmem:[%s2 + $0x28] sm:$0xf]
      %v748 = vld [vmem:[%s2 + $0x2c] sm:$0xf]
      %v749 = vld [vmem:[%s2 + $0x30] sm:$0xf]
      %v750 = vld [vmem:[%s2 + $0x34] sm:$0xf]
      %v751 = vld [vmem:[%s2 + $0x38] sm:$0xf]
      %v752 = vld [vmem:[%s2 + $0x3c] sm:$0xf]
      %v769 = vunpack.c.l.b16 %v737
      %v770 = vunpack.c.l.b16 %v738
      %v771 = vunpack.c.l.b16 %v739
      %v772 = vunpack.c.l.b16 %v740
      %v773 = vunpack.c.l.b16 %v741
      %v774 = vunpack.c.l.b16 %v742
      %v775 = vunpack.c.l.b16 %v743
      %v776 = vunpack.c.l.b16 %v744
      %v777 = vunpack.c.l.b16 %v745
      %v778 = vunpack.c.l.b16 %v746
      %v779 = vunpack.c.l.b16 %v747
      %v780 = vunpack.c.l.b16 %v748
      %v781 = vunpack.c.l.b16 %v749
      %v782 = vunpack.c.l.b16 %v750
      %v783 = vunpack.c.l.b16 %v751
      %v784 = vunpack.c.l.b16 %v752
      %v785 = vpack.c.b16 %v770, %v769
      %v786 = vpack.c.b16 %v772, %v771
      %v787 = vpack.c.b16 %v774, %v773
      %v788 = vpack.c.b16 %v776, %v775
      %v789 = vpack.c.b16 %v778, %v777
      %v790 = vpack.c.b16 %v780, %v779
      %v791 = vpack.c.b16 %v782, %v781
      %v792 = vpack.c.b16 %v784, %v783
      %vm793 = vcmask 392192
      %v795 = vsel %vm793, %v785, 0
      %v798 = vsel %vm793, %v786, 0
      %v801 = vsel %vm793, %v787, 0
      %v804 = vsel %vm793, %v788, 0
      %v807 = vsel %vm793, %v789, 0
      %v810 = vsel %vm793, %v790, 0
      %v813 = vsel %vm793, %v791, 0
      %v816 = vsel %vm793, %v792, 0
      %v819 = vsel %vm793, %v721, 0
      %v822 = vsel %vm793, %v722, 0
      %v825 = vsel %vm793, %v723, 0
      %v828 = vsel %vm793, %v724, 0
      %v831 = vsel %vm793, %v725, 0
      %v834 = vsel %vm793, %v726, 0
      %v837 = vsel %vm793, %v727, 0
      %v840 = vsel %vm793, %v728, 0
      %v843 = vsel %vm793, %v729, 0
      %v846 = vsel %vm793, %v730, 0
      %v849 = vsel %vm793, %v731, 0
      %v852 = vsel %vm793, %v732, 0
      %v855 = vsel %vm793, %v733, 0
      %v858 = vsel %vm793, %v734, 0
      %v861 = vsel %vm793, %v735, 0
      %v864 = vsel %vm793, %v736, 0
      %866 = vmatpush.bf16.xpose.msra.mxu0 %v840
      %867 = vmatpush.bf16.xpose.msra.mxu0 %v837
      %868 = vmatpush.bf16.xpose.msra.mxu0 %v834
      %869 = vmatpush.bf16.xpose.msra.mxu0 %v831
      %870 = vmatpush.bf16.xpose.msra.mxu0 %v828
      %871 = vmatpush.bf16.xpose.msra.mxu0 %v825
      %872 = vmatpush.bf16.xpose.msra.mxu0 %v822
      %873 = vmatpush.bf16.xpose.msra.mxu0 %v819
      %874 = vmatmul.bf16.gmra.mxu0 %v795
      %v875 = vpop.f32.mrf.mxu0
      %v876 = vadd.f32 0.0, %v875
      %v877 = vpop.f32.mrf.mxu0
      %v878 = vadd.f32 0.0, %v877
      %879 = vmatmul.bf16.gmra.mxu0 %v798
      %v880 = vpop.f32.mrf.mxu0
      %v881 = vadd.f32 0.0, %v880
      %v882 = vpop.f32.mrf.mxu0
      %v883 = vadd.f32 0.0, %v882
      %884 = vmatmul.bf16.gmra.mxu0 %v801
      %v885 = vpop.f32.mrf.mxu0
      %v886 = vadd.f32 0.0, %v885
      %v887 = vpop.f32.mrf.mxu0
      %v888 = vadd.f32 0.0, %v887
      %889 = vmatmul.bf16.gmra.mxu0 %v804
      %v890 = vpop.f32.mrf.mxu0
      %v891 = vadd.f32 0.0, %v890
      %v892 = vpop.f32.mrf.mxu0
      %v893 = vadd.f32 0.0, %v892
      %894 = vmatmul.bf16.gmra.mxu0 %v807
      %v895 = vpop.f32.mrf.mxu0
      %v896 = vadd.f32 0.0, %v895
      %v897 = vpop.f32.mrf.mxu0
      %v898 = vadd.f32 0.0, %v897
      %899 = vmatmul.bf16.gmra.mxu0 %v810
      %v900 = vpop.f32.mrf.mxu0
      %v901 = vadd.f32 0.0, %v900
      %v902 = vpop.f32.mrf.mxu0
      %v903 = vadd.f32 0.0, %v902
      %904 = vmatmul.bf16.gmra.mxu0 %v813
      %v905 = vpop.f32.mrf.mxu0
      %v906 = vadd.f32 0.0, %v905
      %v907 = vpop.f32.mrf.mxu0
      %v908 = vadd.f32 0.0, %v907
      %909 = vmatmul.bf16.gmra.mxu0 %v816
      %v910 = vpop.f32.mrf.mxu0
      %v911 = vadd.f32 0.0, %v910
      %v912 = vpop.f32.mrf.mxu0
      %v913 = vadd.f32 0.0, %v912
      %914 = vdwg.mxu0
      %915 = vmatpush.bf16.xpose.msra.mxu0 %v864
      %916 = vmatpush.bf16.xpose.msra.mxu0 %v861
      %917 = vmatpush.bf16.xpose.msra.mxu0 %v858
      %918 = vmatpush.bf16.xpose.msra.mxu0 %v855
      %919 = vmatpush.bf16.xpose.msra.mxu0 %v852
      %920 = vmatpush.bf16.xpose.msra.mxu0 %v849
      %921 = vmatpush.bf16.xpose.msra.mxu0 %v846
      %922 = vmatpush.bf16.xpose.msra.mxu0 %v843
      %923 = vmatmul.bf16.gmra.mxu0 %v795
      %v924 = vpop.f32.mrf.mxu0
      %v925 = vadd.f32 0.0, %v924
      %v926 = vpop.f32.mrf.mxu0
      %v927 = vadd.f32 0.0, %v926
      %928 = vmatmul.bf16.gmra.mxu0 %v798
      %v929 = vpop.f32.mrf.mxu0
      %v930 = vadd.f32 0.0, %v929
      %v931 = vpop.f32.mrf.mxu0
      %v932 = vadd.f32 0.0, %v931
      %933 = vmatmul.bf16.gmra.mxu0 %v801
      %v934 = vpop.f32.mrf.mxu0
      %v935 = vadd.f32 0.0, %v934
      %v936 = vpop.f32.mrf.mxu0
      %v937 = vadd.f32 0.0, %v936
      %938 = vmatmul.bf16.gmra.mxu0 %v804
      %v939 = vpop.f32.mrf.mxu0
      %v940 = vadd.f32 0.0, %v939
      %v941 = vpop.f32.mrf.mxu0
      %v942 = vadd.f32 0.0, %v941
      %943 = vmatmul.bf16.gmra.mxu0 %v807
      %v944 = vpop.f32.mrf.mxu0
      %v945 = vadd.f32 0.0, %v944
      %v946 = vpop.f32.mrf.mxu0
      %v947 = vadd.f32 0.0, %v946
      %948 = vmatmul.bf16.gmra.mxu0 %v810
      %v949 = vpop.f32.mrf.mxu0
      %v950 = vadd.f32 0.0, %v949
      %v951 = vpop.f32.mrf.mxu0
      %v952 = vadd.f32 0.0, %v951
      %953 = vmatmul.bf16.gmra.mxu0 %v813
      %v954 = vpop.f32.mrf.mxu0
      %v955 = vadd.f32 0.0, %v954
      %v956 = vpop.f32.mrf.mxu0
      %v957 = vadd.f32 0.0, %v956
      %958 = vmatmul.bf16.gmra.mxu0 %v816
      %v959 = vpop.f32.mrf.mxu0
      %v960 = vadd.f32 0.0, %v959
      %v961 = vpop.f32.mrf.mxu0
      %v962 = vadd.f32 0.0, %v961
      %963 = vdwg.mxu0
      %vm964 = vcmp.ge.f32.partialorder %v876, 0.0
      %vm965 = vcmp.ge.f32.partialorder %v925, 0.0
      %vm966 = vcmp.ge.f32.partialorder %v878, 0.0
      %vm967 = vcmp.ge.f32.partialorder %v927, 0.0
      %vm968 = vcmp.ge.f32.partialorder %v881, 0.0
      %vm969 = vcmp.ge.f32.partialorder %v930, 0.0
      %vm970 = vcmp.ge.f32.partialorder %v883, 0.0
      %vm971 = vcmp.ge.f32.partialorder %v932, 0.0
      %vm972 = vcmp.ge.f32.partialorder %v886, 0.0
      %vm973 = vcmp.ge.f32.partialorder %v935, 0.0
      %vm974 = vcmp.ge.f32.partialorder %v888, 0.0
      %vm975 = vcmp.ge.f32.partialorder %v937, 0.0
      %vm976 = vcmp.ge.f32.partialorder %v891, 0.0
      %vm977 = vcmp.ge.f32.partialorder %v940, 0.0
      %vm978 = vcmp.ge.f32.partialorder %v893, 0.0
      %vm979 = vcmp.ge.f32.partialorder %v942, 0.0
      %vm980 = vcmp.ge.f32.partialorder %v896, 0.0
      %vm981 = vcmp.ge.f32.partialorder %v945, 0.0
      %vm982 = vcmp.ge.f32.partialorder %v898, 0.0
      %vm983 = vcmp.ge.f32.partialorder %v947, 0.0
      %vm984 = vcmp.ge.f32.partialorder %v901, 0.0
      %vm985 = vcmp.ge.f32.partialorder %v950, 0.0
      %vm986 = vcmp.ge.f32.partialorder %v903, 0.0
      %vm987 = vcmp.ge.f32.partialorder %v952, 0.0
      %vm988 = vcmp.ge.f32.partialorder %v906, 0.0
      %vm989 = vcmp.ge.f32.partialorder %v955, 0.0
      %vm990 = vcmp.ge.f32.partialorder %v908, 0.0
      %vm991 = vcmp.ge.f32.partialorder %v957, 0.0
      %vm992 = vcmp.ge.f32.partialorder %v911, 0.0
      %vm993 = vcmp.ge.f32.partialorder %v960, 0.0
      %vm994 = vcmp.ge.f32.partialorder %v913, 0.0
      %vm995 = vcmp.ge.f32.partialorder %v962, 0.0
      %v996 = vmul.f32 %v876, 0.2
      %v997 = vmul.f32 %v925, 0.2
      %v998 = vmul.f32 %v878, 0.2
      %v999 = vmul.f32 %v927, 0.2
      %v1000 = vmul.f32 %v881, 0.2
      %v1001 = vmul.f32 %v930, 0.2
      %v1002 = vmul.f32 %v883, 0.2
      %v1003 = vmul.f32 %v932, 0.2
      %v1004 = vmul.f32 %v886, 0.2
      %v1005 = vmul.f32 %v935, 0.2
      %v1006 = vmul.f32 %v888, 0.2
      %v1007 = vmul.f32 %v937, 0.2
      %v1008 = vmul.f32 %v891, 0.2
      %v1009 = vmul.f32 %v940, 0.2
      %v1010 = vmul.f32 %v893, 0.2
      %v1011 = vmul.f32 %v942, 0.2
      %v1012 = vmul.f32 %v896, 0.2
      %v1013 = vmul.f32 %v945, 0.2
      %v1014 = vmul.f32 %v898, 0.2
      %v1015 = vmul.f32 %v947, 0.2
      %v1016 = vmul.f32 %v901, 0.2
      %v1017 = vmul.f32 %v950, 0.2
      %v1018 = vmul.f32 %v903, 0.2
      %v1019 = vmul.f32 %v952, 0.2
      %v1020 = vmul.f32 %v906, 0.2
      %v1021 = vmul.f32 %v955, 0.2
      %v1022 = vmul.f32 %v908, 0.2
      %v1023 = vmul.f32 %v957, 0.2
      %v1024 = vmul.f32 %v911, 0.2
      %v1025 = vmul.f32 %v960, 0.2
      %v1026 = vmul.f32 %v913, 0.2
      %v1027 = vmul.f32 %v962, 0.2
      %v1028 = vsel %vm964, %v876, %v996
      %v1029 = vsel %vm965, %v925, %v997
      %v1030 = vsel %vm966, %v878, %v998
      %v1031 = vsel %vm967, %v927, %v999
      %v1032 = vsel %vm968, %v881, %v1000
      %v1033 = vsel %vm969, %v930, %v1001
      %v1034 = vsel %vm970, %v883, %v1002
      %v1035 = vsel %vm971, %v932, %v1003
      %v1036 = vsel %vm972, %v886, %v1004
      %v1037 = vsel %vm973, %v935, %v1005
      %v1038 = vsel %vm974, %v888, %v1006
      %v1039 = vsel %vm975, %v937, %v1007
      %v1040 = vsel %vm976, %v891, %v1008
      %v1041 = vsel %vm977, %v940, %v1009
      %v1042 = vsel %vm978, %v893, %v1010
      %v1043 = vsel %vm979, %v942, %v1011
      %v1044 = vsel %vm980, %v896, %v1012
      %v1045 = vsel %vm981, %v945, %v1013
      %v1046 = vsel %vm982, %v898, %v1014
      %v1047 = vsel %vm983, %v947, %v1015
      %v1048 = vsel %vm984, %v901, %v1016
      %v1049 = vsel %vm985, %v950, %v1017
      %v1050 = vsel %vm986, %v903, %v1018
      %v1051 = vsel %vm987, %v952, %v1019
      %v1052 = vsel %vm988, %v906, %v1020
      %v1053 = vsel %vm989, %v955, %v1021
      %v1054 = vsel %vm990, %v908, %v1022
      %v1055 = vsel %vm991, %v957, %v1023
      %v1056 = vsel %vm992, %v911, %v1024
      %v1057 = vsel %vm993, %v960, %v1025
      %v1058 = vsel %vm994, %v913, %v1026
      %v1059 = vsel %vm995, %v962, %v1027
      %v1060 = vld [vmem:[%s3] sm:$0xf]
      %v1061 = vld [vmem:[%s3 + $0x4] sm:$0xf]
      %v1062 = vld [vmem:[%s3 + $0x8] sm:$0xf]
      %v1063 = vld [vmem:[%s3 + $0xc] sm:$0xf]
      %v1064 = vld [vmem:[%s3 + $0x10] sm:$0xf]
      %v1065 = vld [vmem:[%s3 + $0x14] sm:$0xf]
      %v1066 = vld [vmem:[%s3 + $0x18] sm:$0xf]
      %v1067 = vld [vmem:[%s3 + $0x1c] sm:$0xf]
      %v1068 = vpack.c.bf16 %v1030, %v1028
      %v1069 = vpack.c.bf16 %v1031, %v1029
      %v1070 = vpack.c.bf16 %v1034, %v1032
      %v1071 = vpack.c.bf16 %v1035, %v1033
      %v1072 = vpack.c.bf16 %v1038, %v1036
      %v1073 = vpack.c.bf16 %v1039, %v1037
      %v1074 = vpack.c.bf16 %v1042, %v1040
      %v1075 = vpack.c.bf16 %v1043, %v1041
      %v1076 = vpack.c.bf16 %v1046, %v1044
      %v1077 = vpack.c.bf16 %v1047, %v1045
      %v1078 = vpack.c.bf16 %v1050, %v1048
      %v1079 = vpack.c.bf16 %v1051, %v1049
      %v1080 = vpack.c.bf16 %v1054, %v1052
      %v1081 = vpack.c.bf16 %v1055, %v1053
      %v1082 = vpack.c.bf16 %v1058, %v1056
      %v1083 = vpack.c.bf16 %v1059, %v1057
      %v1084 = vld [vmem:[%s4] sm:$0xff]
      %v1085 = vld [vmem:[%s4 + $0x8] sm:$0xff]
      %v1086 = vld [vmem:[%s4 + $0x10] sm:$0xff]
      %v1087 = vld [vmem:[%s4 + $0x18] sm:$0xff]
      %v1088 = vld [vmem:[%s4 + $0x20] sm:$0xff]
      %v1089 = vld [vmem:[%s4 + $0x28] sm:$0xff]
      %v1090 = vld [vmem:[%s4 + $0x30] sm:$0xff]
      %v1091 = vld [vmem:[%s4 + $0x38] sm:$0xff]
      %1093 = vset.pattern.permute.xlu0 0
      %1094 = vperm.xlu0 %1093, %v1084
      %v1095 = vpop.permute.xlu0 %1094
      %1098 = vset.pattern.permute.xlu0 0
      %1099 = vperm.xlu0 %1098, %v1085
      %v1100 = vpop.permute.xlu0 %1099
      %1103 = vset.pattern.permute.xlu0 0
      %1104 = vperm.xlu0 %1103, %v1086
      %v1105 = vpop.permute.xlu0 %1104
      %1108 = vset.pattern.permute.xlu0 0
      %1109 = vperm.xlu0 %1108, %v1087
      %v1110 = vpop.permute.xlu0 %1109
      %1113 = vset.pattern.permute.xlu0 0
      %1114 = vperm.xlu0 %1113, %v1088
      %v1115 = vpop.permute.xlu0 %1114
      %1118 = vset.pattern.permute.xlu0 0
      %1119 = vperm.xlu0 %1118, %v1089
      %v1120 = vpop.permute.xlu0 %1119
      %1123 = vset.pattern.permute.xlu0 0
      %1124 = vperm.xlu0 %1123, %v1090
      %v1125 = vpop.permute.xlu0 %1124
      %1128 = vset.pattern.permute.xlu0 0
      %1129 = vperm.xlu0 %1128, %v1091
      %v1130 = vpop.permute.xlu0 %1129
      %v1140 = vunpack.c.l.b16 %v1060
      %v1141 = vunpack.c.l.b16 %v1061
      %v1142 = vunpack.c.l.b16 %v1062
      %v1143 = vunpack.c.l.b16 %v1063
      %v1144 = vunpack.c.l.b16 %v1064
      %v1145 = vunpack.c.l.b16 %v1065
      %v1146 = vunpack.c.l.b16 %v1066
      %v1147 = vunpack.c.l.b16 %v1067
      %v1148 = vpack.c.b16 %v1141, %v1140
      %v1149 = vpack.c.b16 %v1143, %v1142
      %v1150 = vpack.c.b16 %v1145, %v1144
      %v1151 = vpack.c.b16 %v1147, %v1146
      %1156 = vmatpush.bf16.msra.mxu0 %v1082
      %1157 = vmatpush.bf16.msra.mxu0 %v1080
      %1158 = vmatpush.bf16.msra.mxu0 %v1078
      %1159 = vmatpush.bf16.msra.mxu0 %v1076
      %1160 = vmatpush.bf16.msra.mxu0 %v1074
      %1161 = vmatpush.bf16.msra.mxu0 %v1072
      %1162 = vmatpush.bf16.msra.mxu0 %v1070
      %1163 = vmatpush.bf16.msra.mxu0 %v1068
      %1164 = vmatmul.bf16.gmra.mxu0 %v1148
      %v1165 = vpop.f32.mrf.mxu0
      %v1166 = vadd.f32 %v1095, %v1165
      %v1167 = vpop.f32.mrf.mxu0
      %v1168 = vadd.f32 %v1100, %v1167
      %1169 = vmatmul.bf16.gmra.mxu0 %v1149
      %v1170 = vpop.f32.mrf.mxu0
      %v1171 = vadd.f32 %v1105, %v1170
      %v1172 = vpop.f32.mrf.mxu0
      %v1173 = vadd.f32 %v1110, %v1172
      %1174 = vmatmul.bf16.gmra.mxu0 %v1150
      %v1175 = vpop.f32.mrf.mxu0
      %v1176 = vadd.f32 %v1115, %v1175
      %v1177 = vpop.f32.mrf.mxu0
      %v1178 = vadd.f32 %v1120, %v1177
      %1179 = vmatmul.bf16.gmra.mxu0 %v1151
      %v1180 = vpop.f32.mrf.mxu0
      %v1181 = vadd.f32 %v1125, %v1180
      %v1182 = vpop.f32.mrf.mxu0
      %v1183 = vadd.f32 %v1130, %v1182
      %1184 = vdwg.mxu0
      %1185 = vmatpush.bf16.msra.mxu0 %v1083
      %1186 = vmatpush.bf16.msra.mxu0 %v1081
      %1187 = vmatpush.bf16.msra.mxu0 %v1079
      %1188 = vmatpush.bf16.msra.mxu0 %v1077
      %1189 = vmatpush.bf16.msra.mxu0 %v1075
      %1190 = vmatpush.bf16.msra.mxu0 %v1073
      %1191 = vmatpush.bf16.msra.mxu0 %v1071
      %1192 = vmatpush.bf16.msra.mxu0 %v1069
      %1193 = vmatmul.bf16.gmra.mxu0 %v1148
      %v1194 = vpop.f32.mrf.mxu0
      %v1195 = vadd.f32 %v1095, %v1194
      %v1196 = vpop.f32.mrf.mxu0
      %v1197 = vadd.f32 %v1100, %v1196
      %1198 = vmatmul.bf16.gmra.mxu0 %v1149
      %v1199 = vpop.f32.mrf.mxu0
      %v1200 = vadd.f32 %v1105, %v1199
      %v1201 = vpop.f32.mrf.mxu0
      %v1202 = vadd.f32 %v1110, %v1201
      %1203 = vmatmul.bf16.gmra.mxu0 %v1150
      %v1204 = vpop.f32.mrf.mxu0
      %v1205 = vadd.f32 %v1115, %v1204
      %v1206 = vpop.f32.mrf.mxu0
      %v1207 = vadd.f32 %v1120, %v1206
      %1208 = vmatmul.bf16.gmra.mxu0 %v1151
      %v1209 = vpop.f32.mrf.mxu0
      %v1210 = vadd.f32 %v1125, %v1209
      %v1211 = vpop.f32.mrf.mxu0
      %v1212 = vadd.f32 %v1130, %v1211
      %1213 = vdwg.mxu0
      %vm1214 = vcmp.ge.f32.partialorder %v1166, 0.0
      %vm1215 = vcmp.ge.f32.partialorder %v1195, 0.0
      %vm1216 = vcmp.ge.f32.partialorder %v1168, 0.0
      %vm1217 = vcmp.ge.f32.partialorder %v1197, 0.0
      %vm1218 = vcmp.ge.f32.partialorder %v1171, 0.0
      %vm1219 = vcmp.ge.f32.partialorder %v1200, 0.0
      %vm1220 = vcmp.ge.f32.partialorder %v1173, 0.0
      %vm1221 = vcmp.ge.f32.partialorder %v1202, 0.0
      %vm1222 = vcmp.ge.f32.partialorder %v1176, 0.0
      %vm1223 = vcmp.ge.f32.partialorder %v1205, 0.0
      %vm1224 = vcmp.ge.f32.partialorder %v1178, 0.0
      %vm1225 = vcmp.ge.f32.partialorder %v1207, 0.0
      %vm1226 = vcmp.ge.f32.partialorder %v1181, 0.0
      %vm1227 = vcmp.ge.f32.partialorder %v1210, 0.0
      %vm1228 = vcmp.ge.f32.partialorder %v1183, 0.0
      %vm1229 = vcmp.ge.f32.partialorder %v1212, 0.0
      %v1230 = vmul.f32 %v1166, 0.2
      %v1231 = vmul.f32 %v1195, 0.2
      %v1232 = vmul.f32 %v1168, 0.2
      %v1233 = vmul.f32 %v1197, 0.2
      %v1234 = vmul.f32 %v1171, 0.2
      %v1235 = vmul.f32 %v1200, 0.2
      %v1236 = vmul.f32 %v1173, 0.2
      %v1237 = vmul.f32 %v1202, 0.2
      %v1238 = vmul.f32 %v1176, 0.2
      %v1239 = vmul.f32 %v1205, 0.2
      %v1240 = vmul.f32 %v1178, 0.2
      %v1241 = vmul.f32 %v1207, 0.2
      %v1242 = vmul.f32 %v1181, 0.2
      %v1243 = vmul.f32 %v1210, 0.2
      %v1244 = vmul.f32 %v1183, 0.2
      %v1245 = vmul.f32 %v1212, 0.2
      %v1246 = vsel %vm1214, %v1166, %v1230
      %v1247 = vsel %vm1215, %v1195, %v1231
      %v1248 = vsel %vm1216, %v1168, %v1232
      %v1249 = vsel %vm1217, %v1197, %v1233
      %v1250 = vsel %vm1218, %v1171, %v1234
      %v1251 = vsel %vm1219, %v1200, %v1235
      %v1252 = vsel %vm1220, %v1173, %v1236
      %v1253 = vsel %vm1221, %v1202, %v1237
      %v1254 = vsel %vm1222, %v1176, %v1238
      %v1255 = vsel %vm1223, %v1205, %v1239
      %v1256 = vsel %vm1224, %v1178, %v1240
      %v1257 = vsel %vm1225, %v1207, %v1241
      %v1258 = vsel %vm1226, %v1181, %v1242
      %v1259 = vsel %vm1227, %v1210, %v1243
      %v1260 = vsel %vm1228, %v1183, %v1244
      %v1261 = vsel %vm1229, %v1212, %v1245
      %v1262 = vld [vmem:[%s5] sm:$0xff]
      %v1263 = vld [vmem:[%s5 + $0x8] sm:$0xff]
      %v1264 = vld [vmem:[%s5 + $0x10] sm:$0xff]
      %v1265 = vld [vmem:[%s5 + $0x18] sm:$0xff]
      %v1266 = vld [vmem:[%s5 + $0x20] sm:$0xff]
      %v1267 = vld [vmem:[%s5 + $0x28] sm:$0xff]
      %v1268 = vld [vmem:[%s5 + $0x30] sm:$0xff]
      %v1269 = vld [vmem:[%s5 + $0x38] sm:$0xff]
      %1271 = vset.pattern.permute.xlu0 0
      %1272 = vperm.xlu0 %1271, %v1262
      %v1273 = vpop.permute.xlu0 %1272
      %1276 = vset.pattern.permute.xlu0 0
      %1277 = vperm.xlu0 %1276, %v1263
      %v1278 = vpop.permute.xlu0 %1277
      %1281 = vset.pattern.permute.xlu0 0
      %1282 = vperm.xlu0 %1281, %v1264
      %v1283 = vpop.permute.xlu0 %1282
      %1286 = vset.pattern.permute.xlu0 0
      %1287 = vperm.xlu0 %1286, %v1265
      %v1288 = vpop.permute.xlu0 %1287
      %1291 = vset.pattern.permute.xlu0 0
      %1292 = vperm.xlu0 %1291, %v1266
      %v1293 = vpop.permute.xlu0 %1292
      %1296 = vset.pattern.permute.xlu0 0
      %1297 = vperm.xlu0 %1296, %v1267
      %v1298 = vpop.permute.xlu0 %1297
      %1301 = vset.pattern.permute.xlu0 0
      %1302 = vperm.xlu0 %1301, %v1268
      %v1303 = vpop.permute.xlu0 %1302
      %1306 = vset.pattern.permute.xlu0 0
      %1307 = vperm.xlu0 %1306, %v1269
      %v1308 = vpop.permute.xlu0 %1307
      %v1310 = vmul.f32 %v1246, %v1273
      %v1311 = vmul.f32 %v1247, %v1273
      %v1312 = vmul.f32 %v1248, %v1278
      %v1313 = vmul.f32 %v1249, %v1278
      %v1314 = vmul.f32 %v1250, %v1283
      %v1315 = vmul.f32 %v1251, %v1283
      %v1316 = vmul.f32 %v1252, %v1288
      %v1317 = vmul.f32 %v1253, %v1288
      %v1318 = vmul.f32 %v1254, %v1293
      %v1319 = vmul.f32 %v1255, %v1293
      %v1320 = vmul.f32 %v1256, %v1298
      %v1321 = vmul.f32 %v1257, %v1298
      %v1322 = vmul.f32 %v1258, %v1303
      %v1323 = vmul.f32 %v1259, %v1303
      %v1324 = vmul.f32 %v1260, %v1308
      %v1325 = vmul.f32 %v1261, %v1308
      %v1326 = vadd.f32 %v1310, %v1312
      %v1327 = vadd.f32 %v1326, %v1314
      %v1328 = vadd.f32 %v1327, %v1316
      %v1329 = vadd.f32 %v1328, %v1318
      %v1330 = vadd.f32 %v1329, %v1320
      %v1331 = vadd.f32 %v1330, %v1322
      %v1332 = vadd.f32 %v1331, %v1324
      %v1333 = vrot.slane %v1332, 4
      %v1334 = vadd.f32 %v1332, %v1333
      %v1335 = vrot.slane %v1334, 2
      %v1336 = vadd.f32 %v1334, %v1335
      %v1337 = vrot.slane %v1336, 1
      %v1338 = vadd.f32 %v1336, %v1337
      %v1339 = vadd.f32 %v1311, %v1313
      %v1340 = vadd.f32 %v1339, %v1315
      %v1341 = vadd.f32 %v1340, %v1317
      %v1342 = vadd.f32 %v1341, %v1319
      %v1343 = vadd.f32 %v1342, %v1321
      %v1344 = vadd.f32 %v1343, %v1323
      %v1345 = vadd.f32 %v1344, %v1325
      %v1346 = vrot.slane %v1345, 4
      %v1347 = vadd.f32 %v1345, %v1346
      %v1348 = vrot.slane %v1347, 2
      %v1349 = vadd.f32 %v1347, %v1348
      %v1350 = vrot.slane %v1349, 1
      %v1351 = vadd.f32 %v1349, %v1350
      %s1352 = sld [smem:[#allocation2]]
      %v1353 = vstv %s1352
      %v1354 = vadd.f32 %v1338, %v1353
      %v1355 = vadd.f32 %v1351, %v1353
      %v1356 = vxor.u32 %v1354, 2147483648
      %v1357 = vxor.u32 %v1355, 2147483648
      %v1358 = vmul.f32 %v1356, 1.442695
      %v1359 = vpow.pop %v1358
      %v1360 = vmul.f32 %v1357, 1.442695
      %v1361 = vpow.pop %v1360
      %v1362 = vadd.f32 %v1359, 1.0
      %v1363 = vadd.f32 %v1361, 1.0
      %v1364 = vrcp.pop %v1362
      %v1365 = vmul.f32 %v1362, %v1364
      %v1366 = vsub.f32 1.0, %v1365
      %v1367 = vmul.f32 %v1364, %v1366
      %v1368 = vadd.f32 %v1364, %v1367
      %vm1369 = vweird.f32 %v1362
      %vm1370 = vweird.f32 %v1364
      %vm1371 = vmor %vm1369, %vm1370
      %v1372 = vsel %vm1371, %v1364, %v1368
      %v1373 = vand.u32 2147483647, %v1362
      %vm1374 = vcmp.eq.f32.partialorder %v1373, 8.507059e+37
      %v1375 = vand.u32 %v1362, 2147483648
      %v1376 = vor.u32 1.1754944e-38, %v1375
      %v1377 = vsel %vm1374, %v1376, %v1372
      %v1378 = vmul.f32 1.0, %v1377
      %v1379 = vrcp.pop %v1363
      %v1380 = vmul.f32 %v1363, %v1379
      %v1381 = vsub.f32 1.0, %v1380
      %v1382 = vmul.f32 %v1379, %v1381
      %v1383 = vadd.f32 %v1379, %v1382
      %vm1384 = vweird.f32 %v1363
      %vm1385 = vweird.f32 %v1379
      %vm1386 = vmor %vm1384, %vm1385
      %v1387 = vsel %vm1386, %v1379, %v1383
      %v1388 = vand.u32 2147483647, %v1363
      %vm1389 = vcmp.eq.f32.partialorder %v1388, 8.507059e+37
      %v1390 = vand.u32 %v1363, 2147483648
      %v1391 = vor.u32 1.1754944e-38, %v1390
      %v1392 = vsel %vm1389, %v1391, %v1387
      %v1393 = vmul.f32 1.0, %v1392
      %v1396 = vrot.slane %v1393, 7
      %vm1397 = vcmask 1040384
      %v1398 = vsel %vm1397, %v1378, %v1396
      %v1400 = vlaneseq
      %vm1401 = vcmp.ge.s32.totalorder %v1400, 0
      %vm1402 = vcmp.lt.s32.totalorder %v1400, 256
      %vm1403 = vmand %vm1401, %vm1402
      %1404 = vst.msk [vmem:[%s301] sm:$0x3] %vm1403, %v1398
      %s1405 = smul.u32 2, %s19
      %p1406 = scmp.lt.s32.totalorder %s1405, 3
      %s1407 = scalar_select %p1406, %s1405, 3
      %s1408 = scalar_lea.vmem %s7, %s1407
      // Predicated region
      $region49: #{_forward.1} parent=47 // pred_check
        %p1409 = pneg %p194
      $region50: #{_forward.1} parent=47 // pred_check_branch
        %1411 = sbr.rel (%p1409) target = $region52
      $region51: #{_forward.1} parent=47 // pred_region
        %s1412 = smul.u32 2, %s19
      $region52: #{_forward.1} parent=47 // pred_fallthru
        _
    $region48: #{_forward.1} parent=5 // pred_fallthru
      _
    %p1413 = scmp.le.s32.totalorder 2, %s14
    // Predicated region
    $region53: #{_forward.1} parent=5 // pred_check
      %p1414 = pneg %p1413
    $region54: #{_forward.1} parent=5 // pred_check_branch
      %1416 = sbr.rel (%p1414) target = $region56
    $region55: #{_forward.1} parent=5 // pred_region
      %s1417 = ssub.s32 %s14, 2
      // Predicated region
      $region57: #{_forward.1} parent=55 // pred_check
        %p1418 = pneg %p200
      $region58: #{_forward.1} parent=55 // pred_check_branch
        %1420 = sbr.rel (%p1418) target = $region60
      $region59: #{_forward.1} parent=55 // pred_region
        %s1421 = smul.u32 2, %s20
        %p1422 = scmp.lt.s32.totalorder %s1421, 3
        %s1423 = scalar_select %p1422, %s1421, 3
        %s1424 = scalar_lea.vmem %s7, %s1423
      $region60: #{_forward.1} parent=55 // pred_fallthru
        _
    $region56: #{_forward.1} parent=5 // pred_fallthru
      _
  $region6: #{_forward.1} parent=0 // loop_footer
    %s18 = sadd.s32 1, %s14
  $region7: #{_forward.1} parent=0 // loop_footer_branch
    %13 = sbr.rel target = $region3
  $region8: #{_forward.1} parent=0 // loop_exit
    _

</llo_original>
